<compile_context>
chip_gen: v7x
topology: tpu7x:2x2x1
jax: 0.10.0
libtpu: 0.0.40
codegen_flags: <defaults>
</compile_context>

<pallas_src>
import jax
import jax.numpy as jnp
from jax.experimental import pallas as pl
from jax.experimental.pallas import tpu as pltpu

U_COMP = 16          # number of competitors per group (module default)
EPS = 1e-5           # stabilization eps (matches concrete_sample)


def lwta_kernel(seed_ref, x_ref, o_ref):
    # x_ref / o_ref: (Bb, U, HW) in VMEM — Bb groups per grid step.
    x = x_ref[...]
    bb, u_dim, hw = x.shape

    # ---------------- counter-based PRNG (portable, all-VPU) -----------------
    seed = seed_ref[0].astype(jnp.uint32)
    pid = pl.program_id(0).astype(jnp.uint32)
    # per-block scalar offset folded once (scalar unit, free on the vector path)
    base = (pid * jnp.uint32((bb * u_dim * hw) & 0xFFFFFFFF)
            + seed * jnp.uint32(0x9E3779B9))

    # global flat element index (unpadded HW => tiling-invariant noise)
    iota_u = jax.lax.broadcasted_iota(jnp.int32, x.shape, 1)      # reused below
    flat = (jax.lax.broadcasted_iota(jnp.int32, x.shape, 0) * (u_dim * hw)
            + iota_u * hw
            + jax.lax.broadcasted_iota(jnp.int32, x.shape, 2))
    ctr = flat.astype(jnp.uint32) + base

    # lowbias32 hash (Chris Wellons): shifts/xors/mults only, good avalanche.
    h = ctr
    h = h ^ (h >> 16)
    h = h * jnp.uint32(0x7FEB352D)
    h = h ^ (h >> 15)
    h = h * jnp.uint32(0x846CA68B)
    h = h ^ (h >> 16)

    # uniform in [0,1): exponent trick — 23 random mantissa bits.
    fbits = (h >> 9) | jnp.uint32(0x3F800000)
    u01 = jax.lax.bitcast_convert_type(fbits, jnp.float32) - 1.0

    # Gumbel(0,1):  g = -log(-log(u + eps) + eps)   (EUP ops)
    g = -jnp.log(-jnp.log(u01 + EPS) + EPS)

    # Forward winner = argmax over U of (x + g) / temp == argmax of (x + g):
    # positive temperature scaling does not change the argmax, and the hard
    # straight-through forward value is the one-hot of that argmax.
    a = x.astype(jnp.float32) + g

    m = jnp.max(a, axis=1, keepdims=True)                          # (Bb,1,HW)
    # first index achieving the max: guarantees exactly one winner per group
    # even on an exact FP tie (matches torch argmax tie order).
    first_idx = jnp.min(jnp.where(a == m, iota_u, u_dim),
                        axis=1, keepdims=True)                     # (Bb,1,HW)

    # fused mask apply in the I/O dtype
    o_ref[...] = jnp.where(iota_u == first_idx, x, jnp.zeros_like(x))


def lwta_forward(x, *, U=U_COMP, seed=0, target_tile_bytes=2 << 20,
                 alias_input=False):
    """x: (N, C, H, W) float, C % U == 0. Returns LWTA(x) with the same shape."""
    N, C, H, W = x.shape
    assert C % U == 0, "channels must be divisible by U"
    G = C // U
    NG = N * G
    HW = H * W
    itemsize = jnp.dtype(x.dtype).itemsize
    lane_pad = ((HW + 127) // 128) * 128      # VMEM lane footprint (no HBM pad)

    xr = x.reshape(NG, U, HW)                 # layout-preserving, no copy

    # VMEM-budgeted groups per grid step; keep >=8 steps when possible so the
    # pipeline overlaps DMA and the "parallel" axis can split across TCs.
    bytes_per_group = U * lane_pad * itemsize
    Bb = max(1, int(target_tile_bytes) // bytes_per_group)
    Bb = min(Bb, NG)
    Bb = max(1, min(Bb, pl.cdiv(NG, 8)))
    grid = (pl.cdiv(NG, Bb),)

    # scoped-VMEM budget: 2x(in)+2x(out) double-buffered tiles + f32 temporaries
    tile_io = Bb * U * lane_pad * itemsize
    tile_f32 = Bb * U * lane_pad * 4
    vmem_limit = int(min(max(4 * tile_io + 6 * tile_f32 + (2 << 20), 8 << 20),
                         32 << 20))

    nelem = N * C * H * W
    seed_arr = jnp.array([seed], dtype=jnp.int32)

    extra = {}
    if alias_input:
        # output reuses x's HBM buffer (only safe if x is dead after this op)
        extra["input_output_aliases"] = {1: 0}

    out = pl.pallas_call(
        lwta_kernel,
        out_shape=jax.ShapeDtypeStruct((NG, U, HW), x.dtype),
        grid_spec=pltpu.PrefetchScalarGridSpec(
            num_scalar_prefetch=1,
            grid=grid,
            in_specs=[pl.BlockSpec((Bb, U, HW), lambda i, seed_ref: (i, 0, 0))],
            out_specs=pl.BlockSpec((Bb, U, HW), lambda i, seed_ref: (i, 0, 0)),
        ),
        compiler_params=pltpu.CompilerParams(
            dimension_semantics=("parallel",),   # counter-based noise -> order-free
            vmem_limit_bytes=vmem_limit),
        cost_estimate=pl.CostEstimate(
            flops=25 * nelem, transcendentals=2 * nelem,
            bytes_accessed=2 * nelem * itemsize),
        **extra,
    )(seed_arr, xr)

    return out.reshape(N, C, H, W)


if __name__ == "__main__":
    key = jax.random.PRNGKey(0)
    # small NCHW input consistent with a ResNet feature map; C multiple of U=16
    N, C, H, W = 2, 32, 16, 16
    x = jax.random.normal(key, (N, C, H, W), dtype=jnp.float32)

    out = lwta_forward(x, U=U_COMP, seed=0)
    out = jax.block_until_ready(out)

    # sanity: exactly one survivor per competitor group at each (n, g, h, w),
    # and the survivor's value equals the input value there.
    mask = (out != 0.0).astype(jnp.int32).reshape(N, C // U_COMP, U_COMP, H, W)
    winners = jnp.sum(mask, axis=2)
    assert out.shape == x.shape
    assert bool(jnp.all(jnp.isfinite(out)))
    assert bool(jnp.all(winners == 1)), "each group must keep exactly one winner"
    assert bool(jnp.all(jnp.where(out != 0.0, out == x, True)))

    # bf16 I/O smoke test (memory-bound op -> half the HBM bytes)
    xb = x.astype(jnp.bfloat16)
    outb = jax.block_until_ready(lwta_forward(xb, U=U_COMP, seed=1))
    maskb = (outb != 0).astype(jnp.int32).reshape(N, C // U_COMP, U_COMP, H, W)
    assert outb.dtype == jnp.bfloat16 and outb.shape == x.shape
    assert bool(jnp.all(jnp.sum(maskb, axis=2) == 1))
    assert bool(jnp.all(jnp.where(outb != 0, outb == xb, True)))

    print("KERNEL_OK")
</pallas_src>

<mosaic_0001>
module attributes {stable_mosaic.version = 11 : i64} {
  func.func @lwta_kernel(%arg0: i32, %arg1: memref<1xi32, #tpu.memory_space<smem>>, %arg2: memref<1x16x256xf32, #tpu.memory_space<vmem>>, %arg3: memref<1x16x256xf32, #tpu.memory_space<vmem>>) attributes {dimension_semantics = [#tpu.dimension_semantics<parallel>], iteration_bounds = array<i64: 4>, scalar_prefetch = 1 : i64, scratch_operands = 0 : i64, tpu.core_type = #tpu.core_type<tc>, window_params = [{transform_indices = @transform_0, window_bounds = array<i64: 1, 16, 256>}, {transform_indices = @transform_1, window_bounds = array<i64: 1, 16, 256>}]} {
    %c0 = arith.constant 0 : index
    %c0_0 = arith.constant 0 : index
    %c0_1 = arith.constant 0 : index
    %0 = vector.load %arg2[%c0, %c0_0, %c0_1] : memref<1x16x256xf32, #tpu.memory_space<vmem>>, vector<1x16x256xf32>
    %c0_2 = arith.constant 0 : index
    %1 = memref.load %arg1[%c0_2] : memref<1xi32, #tpu.memory_space<smem>>
    %c4096_i32 = arith.constant 4096 : i32
    %2 = arith.muli %arg0, %c4096_i32 : i32
    %c-1640531527_i32 = arith.constant -1640531527 : i32
    %3 = arith.muli %1, %c-1640531527_i32 : i32
    %4 = arith.addi %2, %3 : i32
    %5 = tpu.iota {dimensions = array<i32: 1>} : vector<1x16x256xi32>
    %6 = tpu.iota {dimensions = array<i32: 0>} : vector<1x16x256xi32>
    %c4096_i32_3 = arith.constant 4096 : i32
    %7 = vector.broadcast %c4096_i32_3 : i32 to vector<1x16x256xi32>
    %8 = arith.muli %6, %7 : vector<1x16x256xi32>
    %c256_i32 = arith.constant 256 : i32
    %9 = vector.broadcast %c256_i32 : i32 to vector<1x16x256xi32>
    %10 = arith.muli %5, %9 : vector<1x16x256xi32>
    %11 = arith.addi %8, %10 : vector<1x16x256xi32>
    %12 = tpu.iota {dimensions = array<i32: 2>} : vector<1x16x256xi32>
    %13 = arith.addi %11, %12 : vector<1x16x256xi32>
    %14 = vector.broadcast %4 : i32 to vector<1x16x256xi32>
    %15 = arith.addi %13, %14 : vector<1x16x256xi32>
    %c16_i32 = arith.constant 16 : i32
    %16 = vector.broadcast %c16_i32 : i32 to vector<1x16x256xi32>
    %17 = arith.shrui %15, %16 : vector<1x16x256xi32>
    %18 = arith.xori %15, %17 : vector<1x16x256xi32>
    %c2146121005_i32 = arith.constant 2146121005 : i32
    %19 = vector.broadcast %c2146121005_i32 : i32 to vector<1x16x256xi32>
    %20 = arith.muli %18, %19 : vector<1x16x256xi32>
    %c15_i32 = arith.constant 15 : i32
    %21 = vector.broadcast %c15_i32 : i32 to vector<1x16x256xi32>
    %22 = arith.shrui %20, %21 : vector<1x16x256xi32>
    %23 = arith.xori %20, %22 : vector<1x16x256xi32>
    %c-2073254261_i32 = arith.constant -2073254261 : i32
    %24 = vector.broadcast %c-2073254261_i32 : i32 to vector<1x16x256xi32>
    %25 = arith.muli %23, %24 : vector<1x16x256xi32>
    %c16_i32_4 = arith.constant 16 : i32
    %26 = vector.broadcast %c16_i32_4 : i32 to vector<1x16x256xi32>
    %27 = arith.shrui %25, %26 : vector<1x16x256xi32>
    %28 = arith.xori %25, %27 : vector<1x16x256xi32>
    %c9_i32 = arith.constant 9 : i32
    %29 = vector.broadcast %c9_i32 : i32 to vector<1x16x256xi32>
    %30 = arith.shrui %28, %29 : vector<1x16x256xi32>
    %c1065353216_i32 = arith.constant 1065353216 : i32
    %31 = vector.broadcast %c1065353216_i32 : i32 to vector<1x16x256xi32>
    %32 = arith.ori %30, %31 : vector<1x16x256xi32>
    %33 = tpu.bitcast %32 : vector<1x16x256xi32> -> vector<1x16x256xf32>
    %cst = arith.constant 1.000000e+00 : f32
    %34 = vector.broadcast %cst : f32 to vector<1x16x256xf32>
    %35 = arith.subf %33, %34 : vector<1x16x256xf32>
    %cst_5 = arith.constant 9.99999974E-6 : f32
    %36 = vector.broadcast %cst_5 : f32 to vector<1x16x256xf32>
    %37 = arith.addf %35, %36 : vector<1x16x256xf32>
    %38 = math.log %37 : vector<1x16x256xf32>
    %cst_6 = arith.constant 0.000000e+00 : f32
    %39 = vector.broadcast %cst_6 : f32 to vector<1x16x256xf32>
    %40 = arith.subf %39, %38 : vector<1x16x256xf32>
    %cst_7 = arith.constant 9.99999974E-6 : f32
    %41 = vector.broadcast %cst_7 : f32 to vector<1x16x256xf32>
    %42 = arith.addf %40, %41 : vector<1x16x256xf32>
    %43 = math.log %42 : vector<1x16x256xf32>
    %cst_8 = arith.constant 0.000000e+00 : f32
    %44 = vector.broadcast %cst_8 : f32 to vector<1x16x256xf32>
    %45 = arith.subf %44, %43 : vector<1x16x256xf32>
    %46 = arith.addf %0, %45 : vector<1x16x256xf32>
    %cst_9 = arith.constant dense<0xFF800000> : vector<1x256xf32>
    %47 = vector.multi_reduction <maximumf>, %46, %cst_9 [1] : vector<1x16x256xf32> to vector<1x256xf32>
    %48 = vector.shape_cast %47 : vector<1x256xf32> to vector<1x1x256xf32>
    %49 = vector.broadcast %48 : vector<1x1x256xf32> to vector<1x16x256xf32>
    %50 = arith.cmpf oeq, %46, %49 : vector<1x16x256xf32>
    %c16_i32_10 = arith.constant 16 : i32
    %51 = vector.broadcast %c16_i32_10 : i32 to vector<1x16x256xi32>
    %52 = arith.select %50, %5, %51 : vector<1x16x256xi1>, vector<1x16x256xi32>
    %cst_11 = arith.constant dense<2147483647> : vector<1x256xi32>
    %53 = vector.multi_reduction <minsi>, %52, %cst_11 [1] : vector<1x16x256xi32> to vector<1x256xi32>
    %54 = vector.shape_cast %53 : vector<1x256xi32> to vector<1x1x256xi32>
    %55 = vector.broadcast %54 : vector<1x1x256xi32> to vector<1x16x256xi32>
    %56 = arith.cmpi eq, %5, %55 : vector<1x16x256xi32>
    %cst_12 = arith.constant 0.000000e+00 : f32
    %57 = vector.broadcast %cst_12 : f32 to vector<1x16x256xf32>
    %58 = arith.select %56, %0, %57 : vector<1x16x256xi1>, vector<1x16x256xf32>
    %c0_13 = arith.constant 0 : index
    %c0_14 = arith.constant 0 : index
    %c0_15 = arith.constant 0 : index
    %59 = vector.load %arg3[%c0_13, %c0_14, %c0_15] : memref<1x16x256xf32, #tpu.memory_space<vmem>>, vector<1x16x256xf32>
    tpu.vector_store %arg3[%c0_13, %c0_14, %c0_15], %58 {strides = array<i32>} : memref<1x16x256xf32, #tpu.memory_space<vmem>>, vector<1x16x256xf32>,
    return
  }
  func.func @transform_0(%arg0: i32, %arg1: memref<1xi32, #tpu.memory_space<smem>>) -> (i32, i32, i32) {
    %c0_i32 = arith.constant 0 : i32
    %c0_i32_0 = arith.constant 0 : i32
    %c0_i32_1 = arith.constant 0 : i32
    return %arg0, %c0_i32, %c0_i32_0 : i32, i32, i32
  }
  func.func @transform_1(%arg0: i32, %arg1: memref<1xi32, #tpu.memory_space<smem>>) -> (i32, i32, i32) {
    %c0_i32 = arith.constant 0 : i32
    %c0_i32_0 = arith.constant 0 : i32
    %c0_i32_1 = arith.constant 0 : i32
    return %arg0, %c0_i32, %c0_i32_0 : i32, i32, i32
  }
}

</mosaic_0001>

<llo_original>
// kernel: tpu_custom_call.1
$region0: #{tpu_custom_call.1}
  #allocation0 [shape = 'u32[]', space=smem, size = 0x4, offset = 0x4, fixed_abs, tag = 'smem constant byte address 0x4 - core index']
  #allocation1 [shape = 'u32[144,128]{1,0:T(1,128)}', space=vmem, size = 0x12000, scoped, tag = 'internal scratch']
  #allocation2 [shape = 's32[1]{0}', space=sflag, size = 0x4, scoped, tag = 'scoped memory for tpu_custom_call.1']
  #allocation3 [shape = 's32[1]{0:T(128)S(6)}', space=smem, size = 0x200, scoped, tag = 'prefetched SMEM operand 0']
  %s0 = inlined_call_operand.<no memory space> [shape: s32[1], index: 0, kind: input, shape index: {}]
  %s1 = inlined_call_operand.hbm [shape: f32[4,16,256], index: 1, kind: input, shape index: {}]
  %s2 = inlined_call_operand.hbm [shape: f32[4,16,256], index: 2, kind: output, shape index: {}]
  %s3 = sld [smem:[#allocation0]]
  $region41: #{tpu_custom_call.1} parent=0
    _
  %s5 = ssub.s32 1, %s3
  %s6 = scalar_select 0, %s5, %s3
  %7 = sst [smem:[#allocation3]] %s0
  $region1: #{tpu_custom_call.1} parent=0
    #allocation4 [shape = 'u8[32768]{0}', space=vmem, size = 0x8000, scoped, tag = 'input window, operand 1']
    #allocation5 [shape = 's32[2]{0}', space=sflag, size = 0x8, scoped, tag = 'scoped memory for tpu_custom_call.1']
    #allocation6 [shape = 's32[2]{0}', space=sflag, size = 0x8, scoped, tag = 'scoped memory for tpu_custom_call.1']
    #allocation7 [shape = 'u8[32768]{0}', space=vmem, size = 0x8000, scoped, tag = 'output window, operand 0']
    %8 = vsyncpa [#allocation5], 0
    %s9 = scalar_lea.sflag [#allocation5], 1
    %10 = vsyncpa %s9, 0
    %11 = vsyncpa [#allocation6], 0
    %s12 = scalar_lea.sflag [#allocation6], 1
    %13 = vsyncpa %s12, 0
    loop: start=0, step=1, limit=6
    $region2: #{tpu_custom_call.1} parent=1 // loop_pre_header
      _
    $region3: #{tpu_custom_call.1} parent=1 // loop_header
      %s15 = sphi 0, %s19
      %p16 = scmp.ge.s32.totalorder %s15, 6
      %s25 = sphi 0, %s27
      %s28 = sphi 0, %s25
      %s29 = sphi 0, %s28
      %s45 = sphi 0, %s29
      %s51 = sphi 0, %s53
      %s54 = sphi 0, %s51
      %s55 = sphi 0, %s54
      %s71 = sphi 0, %s55
    $region4: #{tpu_custom_call.1} parent=1 // loop_header_branch
      %18 = sbr.rel (%p16) target = $region8
    $region5: #{tpu_custom_call.1} parent=1 // loop_body
      %s20 = ssub.s32 %s15, 1
      %s21 = ssub.s32 %s15, 2
      %s22 = sadd.s32 %s15, 1
      %s23 = ssub.s32 %s15, %s22
      %p24 = scmp.eq.s32.totalorder %s23, 0
      %s26 = sadd.s32 %s25, 1
      %s27 = scalar_select %p24, %s25, %s26
      %p30 = pneg %p24
      %p31 = scmp.eq.s32.totalorder %s15, 3
      %p32 = por %p30, %p31
      %p33 = scmp.ne.s32.totalorder %s25, %s28
      %p34 = scmp.eq.s32.totalorder %s15, 0
      %p35 = por %p33, %p34
      %p36 = scmp.ne.s32.totalorder %s25, %s28
      %p37 = scmp.eq.s32.totalorder %s20, 3
      %p38 = por %p36, %p37
      %p39 = scmp.ne.s32.totalorder %s28, %s29
      %p40 = scmp.eq.s32.totalorder %s20, 0
      %p41 = por %p39, %p40
      %p42 = scmp.ne.s32.totalorder %s28, %s29
      %p43 = scmp.eq.s32.totalorder %s21, 3
      %p44 = por %p42, %p43
      %p46 = scmp.ne.s32.totalorder %s29, %s45
      %p47 = scmp.eq.s32.totalorder %s21, 0
      %p48 = por %p46, %p47
      %s49 = ssub.s32 %s15, %s22
      %p50 = scmp.eq.s32.totalorder %s49, 0
      %s52 = sadd.s32 %s51, 1
      %s53 = scalar_select %p50, %s51, %s52
      %p56 = pneg %p50
      %p57 = scmp.eq.s32.totalorder %s15, 3
      %p58 = por %p56, %p57
      %p59 = scmp.ne.s32.totalorder %s51, %s54
      %p60 = scmp.eq.s32.totalorder %s15, 0
      %p61 = por %p59, %p60
      %p62 = scmp.ne.s32.totalorder %s51, %s54
      %p63 = scmp.eq.s32.totalorder %s20, 3
      %p64 = por %p62, %p63
      %p65 = scmp.ne.s32.totalorder %s54, %s55
      %p66 = scmp.eq.s32.totalorder %s20, 0
      %p67 = por %p65, %p66
      %p68 = scmp.ne.s32.totalorder %s54, %s55
      %p69 = scmp.eq.s32.totalorder %s21, 3
      %p70 = por %p68, %p69
      %p72 = scmp.ne.s32.totalorder %s55, %s71
      %p73 = scmp.eq.s32.totalorder %s21, 0
      %p74 = por %p72, %p73
      %p75 = scmp.le.s32.totalorder 1, %s15
      %p76 = scmp.lt.s32.totalorder %s15, 5
      %p77 = pnand %p75, %p76
      %p78 = pneg %p77
      // Predicated region
      $region9: #{tpu_custom_call.1} parent=5 // pred_check
        _
      $region10: #{tpu_custom_call.1} parent=5 // pred_check_branch
        %80 = sbr.rel (%p77) target = $region12
      $region11: #{tpu_custom_call.1} parent=5 // pred_region
        %s81 = ssub.s32 %s15, 1
      $region12: #{tpu_custom_call.1} parent=5 // pred_fallthru
        _
      %p82 = scmp.lt.s32.totalorder %s15, 4
      // Predicated region
      $region13: #{tpu_custom_call.1} parent=5 // pred_check
        %p83 = pneg %p82
      $region14: #{tpu_custom_call.1} parent=5 // pred_check_branch
        %85 = sbr.rel (%p83) target = $region16
      $region15: #{tpu_custom_call.1} parent=5 // pred_region
        // Predicated region
        $region17: #{tpu_custom_call.1} parent=15 // pred_check
          %p86 = pneg %p35
        $region18: #{tpu_custom_call.1} parent=15 // pred_check_branch
          %88 = sbr.rel (%p86) target = $region20
        $region19: #{tpu_custom_call.1} parent=15 // pred_region
          %s89 = sand.u32 %s25, 1
          %s90 = scalar_lea.sflag [#allocation5], %s89
          %s91 = sand.u32 %s25, 1
          %s92 = smul.addr %s91, 32
          %s93 = scalar_lea.vmem [#allocation4], %s92
          %s95 = ssub.s32 512, 512
          %96 = vsyncadd %s90, %s95
          %s97 = smul.addr %s15, 4
          %s98 = smul.addr %s97, 128
          %s99 = scalar_lea.hbm %s1, %s98
          %s100 = sshll.u32 %s93, 4
          %s101 = int_to_ptr.vmem [resolvable:$true] %s100
          %106 = dma.hbm_to_vmem [thread:$0]  %s99, 512, %s101, %s90, 256, 256, 16
        $region20: #{tpu_custom_call.1} parent=15 // pred_fallthru
          _
      $region16: #{tpu_custom_call.1} parent=5 // pred_fallthru
        _
      %p107 = scmp.le.s32.totalorder 1, %s15
      %p108 = scmp.lt.s32.totalorder %s15, 5
      %p109 = pnand %p107, %p108
      %p110 = pneg %p109
      // Predicated region
      $region21: #{tpu_custom_call.1} parent=5 // pred_check
        _
      $region22: #{tpu_custom_call.1} parent=5 // pred_check_branch
        %112 = sbr.rel (%p109) target = $region24
      $region23: #{tpu_custom_call.1} parent=5 // pred_region
        %s113 = ssub.s32 %s15, 1
        %s114 = sand.u32 %s28, 1
        %s115 = scalar_lea.sflag [#allocation5], %s114
        %s116 = sand.u32 %s28, 1
        %s117 = smul.addr %s116, 32
        %s118 = scalar_lea.vmem [#allocation4], %s117
        // Predicated region
        $region25: #{tpu_custom_call.1} parent=23 // pred_check
          %p119 = pneg %p41
        $region26: #{tpu_custom_call.1} parent=23 // pred_check_branch
          %121 = sbr.rel (%p119) target = $region28
        $region27: #{tpu_custom_call.1} parent=23 // pred_region
          %122 = dma.done %s115, 512
        $region28: #{tpu_custom_call.1} parent=23 // pred_fallthru
          _
        %s123 = sand.u32 %s28, 1
        %s124 = scalar_lea.sflag [#allocation5], %s123
        %s125 = sand.u32 %s28, 1
        %s126 = smul.addr %s125, 32
        %s127 = scalar_lea.vmem [#allocation4], %s126
        %p128 = pneg %p41
        %p129 = pneg %p38
        %p130 = pneg %p67
        %p131 = pneg %p64
        %s132 = sand.u32 %s54, 1
        %s133 = scalar_lea.sflag [#allocation6], %s132
        %s134 = sand.u32 %s54, 1
        %s135 = smul.addr %s134, 32
        %s136 = scalar_lea.vmem [#allocation7], %s135
        %v137 = vld [vmem:[%s118] sm:$0xff]
        %v138 = vld [vmem:[%s118 + $0x8] sm:$0xff]
        %v139 = vld [vmem:[%s118 + $0x10] sm:$0xff]
        %v140 = vld [vmem:[%s118 + $0x18] sm:$0xff]
        %s141 = sld [smem:[#allocation3]]
        %s142 = smul.u32 %s20, 4096
        %s143 = smul.u32 %s141, 2654435769
        %s144 = sadd.s32 %s142, %s143
        %v145 = vlaneseq
        %v146 = vshrl.u32 %v145, 7
        %v147 = vadd.s32 %v146, 8
        %v148 = vmul.u32 %v146, 256
        %v149 = vmul.u32 %v147, 256
        %v150 = vlaneseq
        %v151 = vand.u32 %v150, 127
        %v152 = vadd.s32 %v151, 128
        %v153 = vadd.s32 %v148, %v151
        %v154 = vadd.s32 %v148, %v152
        %v155 = vadd.s32 %v149, %v151
        %v156 = vadd.s32 %v149, %v152
        %v157 = vstv %s144
        %v158 = vadd.s32 %v153, %v157
        %v159 = vadd.s32 %v154, %v157
        %v160 = vadd.s32 %v155, %v157
        %v161 = vadd.s32 %v156, %v157
        %v162 = vshrl.u32 %v158, 16
        %v163 = vshrl.u32 %v159, 16
        %v164 = vshrl.u32 %v160, 16
        %v165 = vshrl.u32 %v161, 16
        %v166 = vxor.u32 %v158, %v162
        %v167 = vxor.u32 %v159, %v163
        %v168 = vxor.u32 %v160, %v164
        %v169 = vxor.u32 %v161, %v165
        %v170 = vmul.u32 %v166, 2146121005
        %v171 = vmul.u32 %v167, 2146121005
        %v172 = vmul.u32 %v168, 2146121005
        %v173 = vmul.u32 %v169, 2146121005
        %v174 = vshrl.u32 %v170, 15
        %v175 = vshrl.u32 %v171, 15
        %v176 = vshrl.u32 %v172, 15
        %v177 = vshrl.u32 %v173, 15
        %v178 = vxor.u32 %v170, %v174
        %v179 = vxor.u32 %v171, %v175
        %v180 = vxor.u32 %v172, %v176
        %v181 = vxor.u32 %v173, %v177
        %v182 = vmul.u32 %v178, 2221713035
        %v183 = vmul.u32 %v179, 2221713035
        %v184 = vmul.u32 %v180, 2221713035
        %v185 = vmul.u32 %v181, 2221713035
        %v186 = vshrl.u32 %v182, 16
        %v187 = vshrl.u32 %v183, 16
        %v188 = vshrl.u32 %v184, 16
        %v189 = vshrl.u32 %v185, 16
        %v190 = vxor.u32 %v182, %v186
        %v191 = vxor.u32 %v183, %v187
        %v192 = vxor.u32 %v184, %v188
        %v193 = vxor.u32 %v185, %v189
        %v194 = vshrl.u32 %v190, 9
        %v195 = vshrl.u32 %v191, 9
        %v196 = vshrl.u32 %v192, 9
        %v197 = vshrl.u32 %v193, 9
        %v198 = vor.u32 %v194, 1065353216
        %v199 = vor.u32 %v195, 1065353216
        %v200 = vor.u32 %v196, 1065353216
        %v201 = vor.u32 %v197, 1065353216
        %v206 = vsub.f32 %v198, 1.0
        %v207 = vsub.f32 %v199, 1.0
        %v208 = vsub.f32 %v200, 1.0
        %v209 = vsub.f32 %v201, 1.0
        %v210 = vadd.f32 %v206, 1e-05
        %v211 = vadd.f32 %v207, 1e-05
        %v212 = vadd.f32 %v208, 1e-05
        %v213 = vadd.f32 %v209, 1e-05
        %v214 = vlog2.pop %v210
        %v215 = vmul.f32 %v214, 0.6931472
        %v216 = vlog2.pop %v211
        %v217 = vmul.f32 %v216, 0.6931472
        %v218 = vlog2.pop %v212
        %v219 = vmul.f32 %v218, 0.6931472
        %v220 = vlog2.pop %v213
        %v221 = vmul.f32 %v220, 0.6931472
        %v222 = vsub.f32 0.0, %v215
        %v223 = vsub.f32 0.0, %v217
        %v224 = vsub.f32 0.0, %v219
        %v225 = vsub.f32 0.0, %v221
        %v226 = vadd.f32 %v222, 1e-05
        %v227 = vadd.f32 %v223, 1e-05
        %v228 = vadd.f32 %v224, 1e-05
        %v229 = vadd.f32 %v225, 1e-05
        %v230 = vlog2.pop %v226
        %v231 = vmul.f32 %v230, 0.6931472
        %v232 = vlog2.pop %v227
        %v233 = vmul.f32 %v232, 0.6931472
        %v234 = vlog2.pop %v228
        %v235 = vmul.f32 %v234, 0.6931472
        %v236 = vlog2.pop %v229
        %v237 = vmul.f32 %v236, 0.6931472
        %v238 = vsub.f32 0.0, %v231
        %v239 = vsub.f32 0.0, %v233
        %v240 = vsub.f32 0.0, %v235
        %v241 = vsub.f32 0.0, %v237
        %v242 = vadd.f32 %v137, %v238
        %v243 = vadd.f32 %v138, %v239
        %v244 = vadd.f32 %v139, %v240
        %v245 = vadd.f32 %v140, %v241
        %v246 = vmax.f32 %v242, %v244
        %v247 = vrot.slane %v246, 4
        %v248 = vmax.f32 %v246, %v247
        %v249 = vrot.slane %v248, 2
        %v250 = vmax.f32 %v248, %v249
        %v251 = vrot.slane %v250, 1
        %v252 = vmax.f32 %v250, %v251
        %v253 = vmax.f32 %v243, %v245
        %v254 = vrot.slane %v253, 4
        %v255 = vmax.f32 %v253, %v254
        %v256 = vrot.slane %v255, 2
        %v257 = vmax.f32 %v255, %v256
        %v258 = vrot.slane %v257, 1
        %v259 = vmax.f32 %v257, %v258
        %vm260 = vcmp.eq.f32.partialorder %v242, %v252
        %vm261 = vcmp.eq.f32.partialorder %v243, %v259
        %vm262 = vcmp.eq.f32.partialorder %v244, %v252
        %vm263 = vcmp.eq.f32.partialorder %v245, %v259
        %v264 = vsel %vm260, %v146, 16
        %v265 = vsel %vm261, %v146, 16
        %v266 = vsel %vm262, %v147, 16
        %v267 = vsel %vm263, %v147, 16
        %vm268 = vcmp.lt.s32.totalorder %v264, %v266
        %v269 = vsel %vm268, %v264, %v266
        %v270 = vrot.slane %v269, 4
        %vm271 = vcmp.lt.s32.totalorder %v269, %v270
        %v272 = vsel %vm271, %v269, %v270
        %v273 = vrot.slane %v272, 2
        %vm274 = vcmp.lt.s32.totalorder %v272, %v273
        %v275 = vsel %vm274, %v272, %v273
        %v276 = vrot.slane %v275, 1
        %vm277 = vcmp.lt.s32.totalorder %v275, %v276
        %v278 = vsel %vm277, %v275, %v276
        %vm279 = vcmp.lt.s32.totalorder %v265, %v267
        %v280 = vsel %vm279, %v265, %v267
        %v281 = vrot.slane %v280, 4
        %vm282 = vcmp.lt.s32.totalorder %v280, %v281
        %v283 = vsel %vm282, %v280, %v281
        %v284 = vrot.slane %v283, 2
        %vm285 = vcmp.lt.s32.totalorder %v283, %v284
        %v286 = vsel %vm285, %v283, %v284
        %v287 = vrot.slane %v286, 1
        %vm288 = vcmp.lt.s32.totalorder %v286, %v287
        %v289 = vsel %vm288, %v286, %v287
        %vm290 = vcmp.eq.s32.totalorder %v146, %v278
        %vm291 = vcmp.eq.s32.totalorder %v146, %v289
        %vm292 = vcmp.eq.s32.totalorder %v147, %v278
        %vm293 = vcmp.eq.s32.totalorder %v147, %v289
        %v294 = vsel %vm290, %v137, 0.0
        %v295 = vsel %vm291, %v138, 0.0
        %v296 = vsel %vm292, %v139, 0.0
        %v297 = vsel %vm293, %v140, 0.0
        %298 = vst [vmem:[%s136] sm:$0xff] %v294
        %299 = vst [vmem:[%s136 + $0x8] sm:$0xff] %v295
        %300 = vst [vmem:[%s136 + $0x10] sm:$0xff] %v296
        %301 = vst [vmem:[%s136 + $0x18] sm:$0xff] %v297
        %s302 = sand.u32 %s54, 1
        %s303 = scalar_lea.sflag [#allocation6], %s302
        %s304 = sand.u32 %s54, 1
        %s305 = smul.addr %s304, 32
        %s306 = scalar_lea.vmem [#allocation7], %s305
        // Predicated region
        $region29: #{tpu_custom_call.1} parent=23 // pred_check
          %p307 = pneg %p64
        $region30: #{tpu_custom_call.1} parent=23 // pred_check_branch
          %309 = sbr.rel (%p307) target = $region32
        $region31: #{tpu_custom_call.1} parent=23 // pred_region
          %s311 = ssub.s32 512, 512
          %312 = vsyncadd %s303, %s311
          %s313 = smul.addr %s20, 4
          %s314 = smul.addr %s313, 128
          %s315 = scalar_lea.hbm %s2, %s314
          %s316 = sshll.u32 %s306, 4
          %s317 = int_to_ptr.vmem [resolvable:$true] %s316
          %322 = dma.vmem_to_hbm [thread:$0]  %s317, 512, %s315, %s303, 256, 256, 16
        $region32: #{tpu_custom_call.1} parent=23 // pred_fallthru
          _
      $region24: #{tpu_custom_call.1} parent=5 // pred_fallthru
        _
      %p323 = scmp.le.s32.totalorder 2, %s15
      // Predicated region
      $region33: #{tpu_custom_call.1} parent=5 // pred_check
        %p324 = pneg %p323
      $region34: #{tpu_custom_call.1} parent=5 // pred_check_branch
        %326 = sbr.rel (%p324) target = $region36
      $region35: #{tpu_custom_call.1} parent=5 // pred_region
        %s327 = ssub.s32 %s15, 2
        // Predicated region
        $region37: #{tpu_custom_call.1} parent=35 // pred_check
          %p328 = pneg %p70
        $region38: #{tpu_custom_call.1} parent=35 // pred_check_branch
          %330 = sbr.rel (%p328) target = $region40
        $region39: #{tpu_custom_call.1} parent=35 // pred_region
          %s331 = sand.u32 %s55, 1
          %s332 = scalar_lea.sflag [#allocation6], %s331
          %s333 = sand.u32 %s55, 1
          %s334 = smul.addr %s333, 32
          %s335 = scalar_lea.vmem [#allocation7], %s334
          %336 = dma.done %s332, 512
        $region40: #{tpu_custom_call.1} parent=35 // pred_fallthru
          _
      $region36: #{tpu_custom_call.1} parent=5 // pred_fallthru
        _
    $region6: #{tpu_custom_call.1} parent=1 // loop_footer
      %s19 = sadd.s32 1, %s15
    $region7: #{tpu_custom_call.1} parent=1 // loop_footer_branch
      %14 = sbr.rel target = $region3
    $region8: #{tpu_custom_call.1} parent=1 // loop_exit
      _
    %337 = vsyncpa [#allocation5], 1
    %s338 = scalar_lea.sflag [#allocation5], 1
    %339 = vsyncpa %s338, 1
    %340 = vsyncpa [#allocation6], 1
    %s341 = scalar_lea.sflag [#allocation6], 1
    %342 = vsyncpa %s341, 1

</llo_original>
